<compile_context>
chip_gen: v7x
topology: tpu7x:2x2x1
jax: 0.10.0
libtpu: 0.0.40
codegen_flags: <defaults>
</compile_context>

<pallas_src>
import functools
import math

import numpy as np
import jax
import jax.numpy as jnp
from jax.experimental import pallas as pl
from jax.experimental.pallas import tpu as pltpu


_VMEM_LIMIT = 48 * 1024 * 1024      # explicit scoped-VMEM cap (safe on v5e/v6e/v7x)
_GN_FUSED_MAX_BYTES = 1 << 20       # one-pass GroupNorm when the (S, C) slab fits in 1 MiB
_GN_TILE_BYTES = 1 << 20            # per-S-tile budget for the tiled two-pass GroupNorm
_CONV_TILE_BYTES = 4 << 20          # per-tile budget for the fused 3x3-conv input halo


# -----------------------------------------------------------------------------
# Tiling helpers
# -----------------------------------------------------------------------------
def _pick_m_tile(M, cap=256):
    """Largest 8-aligned divisor of M that is <= cap (whole M if M <= cap)."""
    if M <= cap:
        return M
    for t in range(cap, 0, -1):
        if M % t == 0 and t % 8 == 0:
            return t
    return M  # no aligned divisor — fall back to a single block


def _pick_conv_row_tile(H, W, Cin, budget=_CONV_TILE_BYTES):
    """Largest divisor of H whose (th+2, W+2, Cin) f32 halo tile fits the budget."""
    best = None
    for th in range(min(H, 64), 0, -1):
        if H % th == 0:
            if best is None:
                best = th
            if (th + 2) * (W + 2) * Cin * 4 <= budget:
                return th
    return best if best is not None else H


def _pick_gn_row_tile(S, C, budget=_GN_TILE_BYTES):
    """Largest 8-aligned divisor of S whose (ts, C) f32 tile fits the budget."""
    for ts in range(min(S, 8192), 0, -1):
        if S % ts == 0 and ts % 8 == 0 and ts * C * 4 <= budget:
            return ts
    return S


# -----------------------------------------------------------------------------
# Pallas kernel: fused matmul (+bias, optional silu in/out, optional fused residual)
# Used for 1x1 convs, the embedding MLP, the per-block affine, attention projection.
# -----------------------------------------------------------------------------
def _matmul_bias_kernel(a_ref, b_ref, bias_ref, *rest,
                        input_silu, output_silu, fuse_res, res_scale):
    if fuse_res:
        res_ref, o_ref = rest
    else:
        (o_ref,) = rest
    a = a_ref[...].astype(jnp.float32)
    if input_silu:
        a = a * jax.nn.sigmoid(a)
    acc = jnp.dot(a.astype(jnp.bfloat16), b_ref[...],          # bf16 x bf16 on the MXU
                  preferred_element_type=jnp.float32)
    acc = acc + bias_ref[...]
    if output_silu:
        acc = acc * jax.nn.sigmoid(acc)
    if fuse_res:
        acc = (acc + res_ref[...].astype(jnp.float32)) * res_scale
    o_ref[...] = acc.astype(o_ref.dtype)


def pallas_matmul_bias(a, b, bias, *, input_silu=False, output_silu=False,
                       residual=None, res_scale=1.0):
    """out = [ (silu?(silu?(a) @ b + bias)) (+ residual) * res_scale ].

    a:(M,K) f32, b:(K,N) (cast to bf16 once), bias:(N,), residual:(M,N) optional.
    K is kept whole (after the im2col fusion K == Cin, bounded), M is tiled.
    """
    M, K = a.shape
    _, N = b.shape
    tm = _pick_m_tile(M)
    b_bf = b.astype(jnp.bfloat16)
    bias2 = bias.reshape(1, N).astype(jnp.float32)

    kernel = functools.partial(_matmul_bias_kernel, input_silu=input_silu,
                               output_silu=output_silu,
                               fuse_res=residual is not None, res_scale=res_scale)
    in_specs = [pl.BlockSpec((tm, K), lambda i: (i, 0)),
                pl.BlockSpec((K, N), lambda i: (0, 0)),
                pl.BlockSpec((1, N), lambda i: (0, 0))]
    args = [a, b_bf, bias2]
    if residual is not None:
        in_specs.append(pl.BlockSpec((tm, N), lambda i: (i, 0)))
        args.append(residual)

    return pl.pallas_call(
        kernel,
        out_shape=jax.ShapeDtypeStruct((M, N), a.dtype),
        grid=(M // tm,),
        in_specs=in_specs,
        out_specs=pl.BlockSpec((tm, N), lambda i: (i, 0)),
        compiler_params=pltpu.CompilerParams(
            dimension_semantics=("parallel",), vmem_limit_bytes=_VMEM_LIMIT),
    )(*args)


# -----------------------------------------------------------------------------
# Pallas kernel: fused 3x3 conv (halo DMA + 9 shifted MXU taps + bias
#                                + optional input-silu + optional fused residual)
# -----------------------------------------------------------------------------
def _conv3x3_kernel(xp_hbm, w_ref, b_ref, *rest, input_silu, fuse_res, res_scale):
    if fuse_res:
        res_ref, o_ref, xbuf, sem = rest
    else:
        o_ref, xbuf, sem = rest
    th, wout, cout = o_ref.shape[1], o_ref.shape[2], o_ref.shape[3]
    cin = w_ref.shape[1]

    n = pl.program_id(0)
    i = pl.program_id(1)
    # Manual halo DMA: rows [i*th, i*th + th + 2) of the spatially padded input.
    cp = pltpu.make_async_copy(xp_hbm.at[n, pl.ds(i * th, th + 2)], xbuf, sem)
    cp.start()
    cp.wait()

    x = xbuf[...].astype(jnp.float32)                     # (th+2, wout+2, cin)
    if input_silu:
        x = x * jax.nn.sigmoid(x)                         # silu(0)=0 keeps padding zero

    acc = jnp.zeros((th * wout, cout), jnp.float32)
    for kh in range(3):
        for kw in range(3):
            patch = x[kh:kh + th, kw:kw + wout, :].reshape(th * wout, cin)
            acc = acc + jnp.dot(patch.astype(jnp.bfloat16), w_ref[kh * 3 + kw],
                                preferred_element_type=jnp.float32)
    acc = acc + b_ref[...]
    y = acc.reshape(th, wout, cout)
    if fuse_res:
        y = (y + res_ref[0].astype(jnp.float32)) * res_scale
    o_ref[0] = y.astype(o_ref.dtype)


def conv2d_3x3(x_nhwc, w_oihw, bias, *, input_silu=False, residual=None, res_scale=1.0):
    """3x3 conv with padding=1 (torch semantics), fully fused in one Pallas kernel."""
    N, H, W, Cin = x_nhwc.shape
    Cout = w_oihw.shape[0]
    xp = jnp.pad(x_nhwc, ((0, 0), (1, 1), (1, 1), (0, 0)))          # (N, H+2, W+2, Cin)
    # OIHW -> (kh*3+kw, Cin, Cout), bf16 once (MXU operand)
    wt = jnp.transpose(w_oihw, (2, 3, 1, 0)).reshape(9, Cin, Cout).astype(jnp.bfloat16)
    bias2 = bias.reshape(1, Cout).astype(jnp.float32)

    th = _pick_conv_row_tile(H, W, Cin)
    kernel = functools.partial(_conv3x3_kernel, input_silu=input_silu,
                               fuse_res=residual is not None, res_scale=res_scale)
    in_specs = [pl.BlockSpec(memory_space=pl.ANY),                   # padded input (HBM)
                pl.BlockSpec((9, Cin, Cout), lambda n, i: (0, 0, 0)),
                pl.BlockSpec((1, Cout), lambda n, i: (0, 0))]
    args = [xp, wt, bias2]
    if residual is not None:
        in_specs.append(pl.BlockSpec((1, th, W, Cout), lambda n, i: (n, i, 0, 0)))
        args.append(residual)

    out = pl.pallas_call(
        kernel,
        out_shape=jax.ShapeDtypeStruct((N, H, W, Cout), x_nhwc.dtype),
        grid=(N, H // th),
        in_specs=in_specs,
        out_specs=pl.BlockSpec((1, th, W, Cout), lambda n, i: (n, i, 0, 0)),
        scratch_shapes=[pltpu.VMEM((th + 2, W + 2, Cin), x_nhwc.dtype),
                        pltpu.SemaphoreType.DMA(())],
        compiler_params=pltpu.CompilerParams(
            dimension_semantics=("parallel", "arbitrary"),
            vmem_limit_bytes=_VMEM_LIMIT),
    )(*args)
    return out


def conv2d_1x1(x_nhwc, w_oi11, bias, *, input_silu=False, residual=None, res_scale=1.0):
    N, H, W, Cin = x_nhwc.shape
    Cout = w_oi11.shape[0]
    a = x_nhwc.reshape(N * H * W, Cin)
    wt = w_oi11.reshape(Cout, Cin).T
    res = None if residual is None else residual.reshape(N * H * W, Cout)
    out = pallas_matmul_bias(a, wt, bias, input_silu=input_silu,
                             residual=res, res_scale=res_scale)
    return out.reshape(N, H, W, Cout)


# -----------------------------------------------------------------------------
# Pallas kernels: GroupNorm (fused shift-add, optional silu)
#   - small activations: single fused kernel per batch element
#   - large activations: tiled two-pass (stats accumulate over S tiles, then normalize)
# -----------------------------------------------------------------------------
def _gn_fused_kernel(x_ref, shift_ref, w_ref, b_ref, cmap_ref, gmap_ref, o_ref, *,
                     eps, inv_count, apply_silu):
    x = x_ref[0].astype(jnp.float32) + shift_ref[0].astype(jnp.float32)     # (S, C)
    s1 = jnp.sum(x, axis=0, keepdims=True)
    s2 = jnp.sum(x * x, axis=0, keepdims=True)
    cmap = cmap_ref[...]                                                    # (C, G)
    gmap = gmap_ref[...]                                                    # (G, C)
    m_g = jnp.dot(s1, cmap, preferred_element_type=jnp.float32) * inv_count
    e2_g = jnp.dot(s2, cmap, preferred_element_type=jnp.float32) * inv_count
    # TODO(synk): single-pass E[x^2]-E[x]^2 in f32; switch to Welford if activations grow.
    var_g = jnp.maximum(e2_g - m_g * m_g, 0.0)
    r_g = jax.lax.rsqrt(var_g + eps)
    mean_c = jnp.dot(m_g, gmap, preferred_element_type=jnp.float32)
    rstd_c = jnp.dot(r_g, gmap, preferred_element_type=jnp.float32)
    y = (x - mean_c) * rstd_c * w_ref[...] + b_ref[...]
    if apply_silu:
        y = y * jax.nn.sigmoid(y)
    o_ref[0] = y.astype(o_ref.dtype)


def _gn_stats_kernel(x_ref, shift_ref, cmap_ref, gmap_ref, mean_ref, rstd_ref, *,
                     eps, inv_count):
    s_idx = pl.program_id(1)

    @pl.when(s_idx == 0)
    def _init():
        mean_ref[...] = jnp.zeros_like(mean_ref)
        rstd_ref[...] = jnp.zeros_like(rstd_ref)

    x = x_ref[0].astype(jnp.float32) + shift_ref[0].astype(jnp.float32)     # (TS, C)
    mean_ref[0] += jnp.sum(x, axis=0, keepdims=True)      # running per-channel sum
    rstd_ref[0] += jnp.sum(x * x, axis=0, keepdims=True)  # running per-channel sumsq

    @pl.when(s_idx == pl.num_programs(1) - 1)
    def _finalize():
        cmap = cmap_ref[...]
        gmap = gmap_ref[...]
        m_g = jnp.dot(mean_ref[0], cmap, preferred_element_type=jnp.float32) * inv_count
        e2_g = jnp.dot(rstd_ref[0], cmap, preferred_element_type=jnp.float32) * inv_count
        var_g = jnp.maximum(e2_g - m_g * m_g, 0.0)
        r_g = jax.lax.rsqrt(var_g + eps)
        mean_ref[0] = jnp.dot(m_g, gmap, preferred_element_type=jnp.float32)   # (1, C)
        rstd_ref[0] = jnp.dot(r_g, gmap, preferred_element_type=jnp.float32)   # (1, C)


def _gn_apply_kernel(x_ref, shift_ref, mean_ref, rstd_ref, w_ref, b_ref, o_ref, *,
                     apply_silu):
    x = x_ref[0].astype(jnp.float32) + shift_ref[0].astype(jnp.float32)
    y = (x - mean_ref[0]) * rstd_ref[0] * w_ref[...] + b_ref[...]
    if apply_silu:
        y = y * jax.nn.sigmoid(y)
    o_ref[0] = y.astype(o_ref.dtype)


def pallas_group_norm(x_nhwc, weight, bias, groups, eps, apply_silu=False, shift=None):
    """GroupNorm (torch semantics, biased variance) with optional fused per-(n,c) shift
    added to the input and optional fused SiLU on the output."""
    N, H, W, C = x_nhwc.shape
    S = H * W
    cg = C // groups
    inv_count = 1.0 / float(S * cg)
    x3 = x_nhwc.reshape(N, S, C)
    if shift is None:
        shift3 = jnp.zeros((N, 1, C), x_nhwc.dtype)
    else:
        shift3 = shift.reshape(N, 1, C).astype(x_nhwc.dtype)
    cmap = jax.nn.one_hot(jnp.arange(C) // cg, groups, dtype=jnp.float32)   # (C, G)
    gmap = cmap.T                                                           # (G, C)
    w2 = weight.reshape(1, C).astype(jnp.float32)
    b2 = bias.reshape(1, C).astype(jnp.float32)

    if S * C * 4 <= _GN_FUSED_MAX_BYTES:
        kernel = functools.partial(_gn_fused_kernel, eps=eps, inv_count=inv_count,
                                   apply_silu=apply_silu)
        out = pl.pallas_call(
            kernel,
            out_shape=jax.ShapeDtypeStruct((N, S, C), x_nhwc.dtype),
            grid=(N,),
            in_specs=[pl.BlockSpec((1, S, C), lambda n: (n, 0, 0)),
                      pl.BlockSpec((1, 1, C), lambda n: (n, 0, 0)),
                      pl.BlockSpec((1, C), lambda n: (0, 0)),
                      pl.BlockSpec((1, C), lambda n: (0, 0)),
                      pl.BlockSpec((C, groups), lambda n: (0, 0)),
                      pl.BlockSpec((groups, C), lambda n: (0, 0))],
            out_specs=pl.BlockSpec((1, S, C), lambda n: (n, 0, 0)),
            compiler_params=pltpu.CompilerParams(
                dimension_semantics=("parallel",), vmem_limit_bytes=_VMEM_LIMIT),
        )(x3, shift3, w2, b2, cmap, gmap)
        return out.reshape(N, H, W, C)

    # --- tiled two-pass path (large S*C): stats over S tiles, then normalize ---
    ts = _pick_gn_row_tile(S, C)
    n_s = S // ts
    stats_kernel = functools.partial(_gn_stats_kernel, eps=eps, inv_count=inv_count)
    mean_c, rstd_c = pl.pallas_call(
        stats_kernel,
        out_shape=(jax.ShapeDtypeStruct((N, 1, C), jnp.float32),
                   jax.ShapeDtypeStruct((N, 1, C), jnp.float32)),
        grid=(N, n_s),
        in_specs=[pl.BlockSpec((1, ts, C), lambda n, s: (n, s, 0)),
                  pl.BlockSpec((1, 1, C), lambda n, s: (n, 0, 0)),
                  pl.BlockSpec((C, groups), lambda n, s: (0, 0)),
                  pl.BlockSpec((groups, C), lambda n, s: (0, 0))],
        out_specs=(pl.BlockSpec((1, 1, C), lambda n, s: (n, 0, 0)),
                   pl.BlockSpec((1, 1, C), lambda n, s: (n, 0, 0))),
        compiler_params=pltpu.CompilerParams(
            dimension_semantics=("parallel", "arbitrary"),
            vmem_limit_bytes=_VMEM_LIMIT),
    )(x3, shift3, cmap, gmap)

    apply_kernel = functools.partial(_gn_apply_kernel, apply_silu=apply_silu)
    out = pl.pallas_call(
        apply_kernel,
        out_shape=jax.ShapeDtypeStruct((N, S, C), x_nhwc.dtype),
        grid=(N, n_s),
        in_specs=[pl.BlockSpec((1, ts, C), lambda n, s: (n, s, 0)),
                  pl.BlockSpec((1, 1, C), lambda n, s: (n, 0, 0)),
                  pl.BlockSpec((1, 1, C), lambda n, s: (n, 0, 0)),
                  pl.BlockSpec((1, 1, C), lambda n, s: (n, 0, 0)),
                  pl.BlockSpec((1, C), lambda n, s: (0, 0)),
                  pl.BlockSpec((1, C), lambda n, s: (0, 0))],
        out_specs=pl.BlockSpec((1, ts, C), lambda n, s: (n, s, 0)),
        compiler_params=pltpu.CompilerParams(
            dimension_semantics=("parallel", "arbitrary"),
            vmem_limit_bytes=_VMEM_LIMIT),
    )(x3, shift3, mean_c, rstd_c, w2, b2)
    return out.reshape(N, H, W, C)


def _group_norm_reference(x_nhwc, weight, bias, groups, eps):
    """Plain-JAX reference used only by the self-test."""
    N, H, W, C = x_nhwc.shape
    xg = x_nhwc.reshape(N, H * W, groups, C // groups).astype(jnp.float32)
    mean = xg.mean(axis=(1, 3), keepdims=True)
    var = jnp.square(xg - mean).mean(axis=(1, 3), keepdims=True)
    y = (xg - mean) * jax.lax.rsqrt(var + eps)
    return y.reshape(N, H, W, C) * weight.reshape(1, 1, 1, C) + bias.reshape(1, 1, 1, C)


# -----------------------------------------------------------------------------
# Pallas kernel: self-attention (one (S, C) head per grid step)
# -----------------------------------------------------------------------------
def _attention_kernel(q_ref, k_ref, v_ref, o_ref, *, scale):
    q = q_ref[0].astype(jnp.bfloat16)                       # (S, C)
    k = k_ref[0].astype(jnp.bfloat16)
    v = v_ref[0].astype(jnp.bfloat16)
    w = jax.lax.dot_general(q, k, (((1,), (1,)), ((), ())),
                            preferred_element_type=jnp.float32) * scale     # (S, S)
    w = w - jnp.max(w, axis=-1, keepdims=True)
    w = jnp.exp(w)
    w = w * pl.reciprocal(jnp.sum(w, axis=-1, keepdims=True), approx=True)
    o_ref[0] = jnp.dot(w.astype(jnp.bfloat16), v,
                       preferred_element_type=jnp.float32).astype(o_ref.dtype)


def pallas_attention(q, k, v):
    """q,k,v: (B, S, C) -> softmax(q k^T / sqrt(C)) v, per batch/head element."""
    B, S, C = q.shape
    kernel = functools.partial(_attention_kernel, scale=1.0 / math.sqrt(C))
    spec = pl.BlockSpec((1, S, C), lambda b: (b, 0, 0))
    return pl.pallas_call(
        kernel,
        out_shape=jax.ShapeDtypeStruct((B, S, C), q.dtype),
        grid=(B,),
        in_specs=[spec, spec, spec],
        out_specs=spec,
        compiler_params=pltpu.CompilerParams(
            dimension_semantics=("parallel",), vmem_limit_bytes=_VMEM_LIMIT),
    )(q, k, v)


# -----------------------------------------------------------------------------
# JAX glue: resampling, embeddings
# -----------------------------------------------------------------------------
def down2x2(x):
    # resample_filter=[1,1] depthwise stride-2 conv == 2x2 average pooling
    # TODO(synk): could be folded into the following conv's halo DMA / GN prologue.
    N, H, W, C = x.shape
    return x.reshape(N, H // 2, 2, W // 2, 2, C).mean(axis=(2, 4))


def up2x2(x):
    # conv_transpose with 4*f (ones 2x2), stride 2 == nearest-neighbour upsample
    return jnp.repeat(jnp.repeat(x, 2, axis=1), 2, axis=2)


def _ngroups(c, num_groups=32, min_channels_per_group=4):
    return min(num_groups, c // min_channels_per_group)


def sinusoidal_pos_embd(H, W):
    # gridtype='sinusoidal', N_grid_channels=4
    x1 = np.sin(np.linspace(0, 2 * np.pi, H))
    x2 = np.cos(np.linspace(0, 2 * np.pi, H))
    y1 = np.sin(np.linspace(0, 2 * np.pi, W))
    y2 = np.cos(np.linspace(0, 2 * np.pi, W))
    gx1, gy1 = np.meshgrid(y1, x1)     # (H, W)
    gx2, gy2 = np.meshgrid(y2, x2)
    grid = np.stack((gx1, gy1, gx2, gy2), axis=0)   # (4, H, W)
    return jnp.asarray(grid, dtype=jnp.float32)


def positional_embedding_indexing(pos_embd, x_nchw, global_index=None):
    if global_index is None:
        return jnp.broadcast_to(pos_embd[None], (x_nchw.shape[0],) + pos_embd.shape)
    B, _, X, Y = global_index.shape
    gi = jnp.transpose(global_index, (1, 0, 2, 3)).reshape(2, -1)
    sel = pos_embd[:, gi[0], gi[1]]
    return jnp.transpose(sel.reshape(pos_embd.shape[0], B, X, Y), (1, 0, 2, 3))


# -----------------------------------------------------------------------------
# Deterministic parameter construction (mirrors the PyTorch __init__ structure)
# -----------------------------------------------------------------------------
class ParamFactory:
    def __init__(self, seed=0):
        self.key = jax.random.PRNGKey(seed)

    def _next(self):
        self.key, sub = jax.random.split(self.key)
        return sub

    def linear(self, in_f, out_f, init_weight=1.0):
        scale = math.sqrt(6.0 / (in_f + out_f)) * init_weight
        w = (jax.random.uniform(self._next(), (out_f, in_f), jnp.float32) * 2 - 1) * scale
        return {'w': w, 'b': jnp.zeros((out_f,), jnp.float32)}

    def conv(self, cin, cout, k, init_weight=1.0):
        fan_in, fan_out = cin * k * k, cout * k * k
        scale = math.sqrt(6.0 / (fan_in + fan_out)) * init_weight
        w = (jax.random.uniform(self._next(), (cout, cin, k, k), jnp.float32) * 2 - 1) * scale
        return {'w': w, 'b': jnp.zeros((cout,), jnp.float32)}

    def groupnorm(self, c):
        return {'w': jnp.ones((c,), jnp.float32), 'b': jnp.zeros((c,), jnp.float32)}


def make_unet_block(pf, cin, cout, emb_ch, *, up=False, down=False, attention=False):
    p = dict(in_channels=cin, out_channels=cout, up=up, down=down,
             num_heads=1 if attention else 0, eps=1e-6, skip_scale=math.sqrt(0.5))
    p['norm0'] = pf.groupnorm(cin)
    p['conv0'] = pf.conv(cin, cout, 3)
    p['affine'] = pf.linear(emb_ch, cout)                     # adaptive_scale=False
    p['norm1'] = pf.groupnorm(cout)
    p['conv1'] = pf.conv(cout, cout, 3, init_weight=1e-5)     # init_zero
    if cout != cin or up or down:
        p['skip'] = pf.conv(cin, cout, 1)                     # resample_proj=True -> 1x1
    else:
        p['skip'] = None
    if attention:
        p['norm2'] = pf.groupnorm(cout)
        qkv = pf.conv(cout, 3 * cout, 1, init_weight=math.sqrt(0.2))       # init_attn
        # Permute qkv output channels ONCE so q/k/v are contiguous thirds (equivalent to
        # torch's interleaved reshape(N, C, 3, HW) view of the unpermuted weight).
        perm = np.concatenate([np.arange(cout) * 3 + j for j in range(3)])
        p['qkv'] = {'w': qkv['w'][perm], 'b': qkv['b'][perm]}
        p['proj'] = pf.conv(cout, cout, 1, init_weight=1e-5)               # init_zero
    return p


def build_params(pf, cfg):
    mc = cfg['model_channels']
    emb_ch = mc * cfg['channel_mult_emb']
    noise_ch = mc * cfg['channel_mult_noise']
    res0 = cfg['img_resolution']
    params = {
        'map_layer0': pf.linear(noise_ch, emb_ch),
        'map_layer1': pf.linear(emb_ch, emb_ch),
    }

    enc = []
    cout = cfg['in_channels']
    for level, mult in enumerate(cfg['channel_mult']):
        res = res0 >> level
        if level == 0:
            cin, cout = cout, mc
            enc.append((f'{res}x{res}_conv',
                        dict(type='conv', out_channels=cout, **pf.conv(cin, cout, 3))))
        else:
            enc.append((f'{res}x{res}_down',
                        dict(type='block', **make_unet_block(pf, cout, cout, emb_ch, down=True))))
        for idx in range(cfg['num_blocks']):
            cin, cout = cout, mc * mult
            attn = res in cfg['attn_resolutions']
            enc.append((f'{res}x{res}_block{idx}',
                        dict(type='block', **make_unet_block(pf, cin, cout, emb_ch, attention=attn))))
    params['enc'] = enc
    skips = [blk['out_channels'] for _, blk in enc]

    dec = []
    for level, mult in reversed(list(enumerate(cfg['channel_mult']))):
        res = res0 >> level
        if level == len(cfg['channel_mult']) - 1:
            dec.append((f'{res}x{res}_in0',
                        dict(type='block', **make_unet_block(pf, cout, cout, emb_ch, attention=True))))
            dec.append((f'{res}x{res}_in1',
                        dict(type='block', **make_unet_block(pf, cout, cout, emb_ch))))
        else:
            dec.append((f'{res}x{res}_up',
                        dict(type='block', **make_unet_block(pf, cout, cout, emb_ch, up=True))))
        for idx in range(cfg['num_blocks'] + 1):
            cin = cout + skips.pop()
            cout = mc * mult
            attn = (idx == cfg['num_blocks']) and (res in cfg['attn_resolutions'])
            dec.append((f'{res}x{res}_block{idx}',
                        dict(type='block', **make_unet_block(pf, cin, cout, emb_ch, attention=attn))))
        if level == 0:   # decoder_type == 'standard'
            dec.append((f'{res}x{res}_aux_norm',
                        dict(type='aux_norm', **pf.groupnorm(cout))))
            dec.append((f'{res}x{res}_aux_conv',
                        dict(type='aux_conv', **pf.conv(cout, cfg['out_channels'], 3,
                                                        init_weight=1e-5))))
    params['dec'] = dec
    params['pos_embd'] = sinusoidal_pos_embd(res0, res0)
    return params


# -----------------------------------------------------------------------------
# Forward pass (mirrors SongUNet.forward / SongUNetPosEmbd.forward, eval mode)
# -----------------------------------------------------------------------------
def unet_block_forward(p, x, emb):
    eps, ss = p['eps'], p['skip_scale']
    cout = p['out_channels']
    orig = x
    h = pallas_group_norm(x, p['norm0']['w'], p['norm0']['b'],
                          _ngroups(p['in_channels']), eps, apply_silu=True)
    if p['up']:
        h = up2x2(h)
    if p['down']:
        h = down2x2(h)
    h = conv2d_3x3(h, p['conv0']['w'], p['conv0']['b'])

    # skip path (computed first so it can be fused as conv1's residual epilogue)
    if p['skip'] is not None:
        o = orig
        if p['up']:
            o = up2x2(o)
        if p['down']:
            o = down2x2(o)
        orig = conv2d_1x1(o, p['skip']['w'], p['skip']['b'])

    # adaptive_scale=False:  x = silu(norm1(x + affine(emb)))  — shift fused into GN
    shift = pallas_matmul_bias(emb, p['affine']['w'].T, p['affine']['b'])      # (N, cout)
    h = pallas_group_norm(h, p['norm1']['w'], p['norm1']['b'],
                          _ngroups(cout), eps, apply_silu=True, shift=shift)
    # TODO(synk): dropout (p=0.13) is identity in eval mode; not applied here.
    # conv1 with fused residual:  h = (conv1(h) + orig) * skip_scale
    h = conv2d_3x3(h, p['conv1']['w'], p['conv1']['b'], residual=orig, res_scale=ss)

    if p['num_heads']:
        n2 = pallas_group_norm(h, p['norm2']['w'], p['norm2']['b'], _ngroups(cout), eps)
        qkv = conv2d_1x1(n2, p['qkv']['w'], p['qkv']['b'])          # (N,H,W,3*cout)
        N, H, W, _ = qkv.shape
        qkv = qkv.reshape(N, H * W, 3 * cout)
        q = qkv[:, :, :cout]                 # contiguous thirds (weights pre-permuted)
        k = qkv[:, :, cout:2 * cout]
        v = qkv[:, :, 2 * cout:]
        a = pallas_attention(q, k, v).reshape(N, H, W, cout)
        # fused: h = (proj(a) + h) * skip_scale
        h = conv2d_1x1(a, p['proj']['w'], p['proj']['b'], residual=h, res_scale=ss)
    return h


def song_unet_forward(params, cfg, x_nhwc, noise_labels, class_labels):
    mc = cfg['model_channels']
    noise_ch = mc * cfg['channel_mult_noise']
    half = noise_ch // 2
    N = noise_labels.shape[0]
    # PositionalEmbedding(endpoint=True) + reshape(N,2,-1).flip(1) trick
    freqs = jnp.arange(half, dtype=jnp.float32) / (half - 1)
    freqs = (1.0 / 10000.0) ** freqs
    t = noise_labels.astype(jnp.float32)[:, None] * freqs[None, :]
    emb = jnp.concatenate([jnp.cos(t), jnp.sin(t)], axis=1)
    emb = emb.reshape(N, 2, half)[:, ::-1, :].reshape(N, noise_ch)
    # label_dim == 0, augment_dim == 0: no map_label / map_augment
    emb = pallas_matmul_bias(emb, params['map_layer0']['w'].T,
                             params['map_layer0']['b'], output_silu=True)
    emb = pallas_matmul_bias(emb, params['map_layer1']['w'].T,
                             params['map_layer1']['b'], output_silu=True)

    # Encoder (standard)
    skips = []
    x = x_nhwc
    for _, blk in params['enc']:
        if blk['type'] == 'conv':
            x = conv2d_3x3(x, blk['w'], blk['b'])
        else:
            x = unet_block_forward(blk, x, emb)
        skips.append(x)

    # Decoder (standard)
    aux, tmp = None, None
    for _, blk in params['dec']:
        if blk['type'] == 'aux_norm':
            tmp = pallas_group_norm(x, blk['w'], blk['b'], _ngroups(x.shape[-1]), 1e-6)
        elif blk['type'] == 'aux_conv':
            t2 = conv2d_3x3(tmp, blk['w'], blk['b'], input_silu=True)   # conv(silu(tmp))
            aux = t2 if aux is None else t2 + aux
        else:
            if x.shape[-1] != blk['in_channels']:
                x = jnp.concatenate([x, skips.pop()], axis=-1)
            x = unet_block_forward(blk, x, emb)
    return aux


def song_unet_pos_embd_forward(params, cfg, x_nchw, noise_labels, class_labels,
                               global_index=None, augment_labels=None):
    pos = positional_embedding_indexing(params['pos_embd'], x_nchw, global_index)
    x = jnp.concatenate([x_nchw, pos.astype(x_nchw.dtype)], axis=1)   # channel concat
    x = jnp.transpose(x, (0, 2, 3, 1))                                # NCHW -> NHWC
    out = song_unet_forward(params, cfg, x, noise_labels, class_labels)
    return jnp.transpose(out, (0, 3, 1, 2))                           # NHWC -> NCHW


# -----------------------------------------------------------------------------
# Main
# -----------------------------------------------------------------------------
if __name__ == "__main__":
    # Small config consistent with SongUNetPosEmbd:
    #   image channels = 4, N_grid_channels = 4  ->  in_channels = 8
    cfg = dict(img_resolution=16, in_channels=8, out_channels=4,
               model_channels=16, channel_mult=[1, 2], channel_mult_emb=4,
               num_blocks=2, attn_resolutions=[8], channel_mult_noise=1,
               N_grid_channels=4)

    pf = ParamFactory(seed=0)
    params = build_params(pf, cfg)

    key = jax.random.PRNGKey(0)
    k1, k2, k3 = jax.random.split(key, 3)
    x = jax.random.normal(k1, (2, 4, 16, 16), jnp.float32)       # NCHW image
    noise_labels = jax.random.normal(k2, (2,), jnp.float32)
    class_labels = jnp.zeros((2, 1), jnp.float32)                # label_dim=0 -> unused

    out = song_unet_pos_embd_forward(params, cfg, x, noise_labels, class_labels)
    out = jax.block_until_ready(out)
    assert out.shape == (2, 4, 16, 16), out.shape
    assert bool(jnp.all(jnp.isfinite(out)))

    # Smoke-test the tiled two-pass GroupNorm path (too large for the fused path) against
    # a plain-JAX reference, so both GN code paths are compiled and validated on-device.
    xg = jax.random.normal(k3, (1, 64, 64, 128), jnp.float32)
    wg = jnp.linspace(0.8, 1.2, 128, dtype=jnp.float32)
    bg = jnp.linspace(-0.1, 0.1, 128, dtype=jnp.float32)
    y_k = jax.block_until_ready(pallas_group_norm(xg, wg, bg, _ngroups(128), 1e-6))
    y_r = _group_norm_reference(xg, wg, bg, _ngroups(128), 1e-6)
    assert bool(jnp.allclose(y_k, y_r, rtol=1e-2, atol=1e-3))

    print("KERNEL_OK")
</pallas_src>

<mosaic_0001>
module attributes {stable_mosaic.version = 11 : i64} {
  func.func @_matmul_bias_kernel(%arg0: i32, %arg1: memref<2x16xf32, #tpu.memory_space<vmem>>, %arg2: memref<16x64xbf16, #tpu.memory_space<vmem>>, %arg3: memref<1x64xf32, #tpu.memory_space<vmem>>, %arg4: memref<2x64xf32, #tpu.memory_space<vmem>>) attributes {dimension_semantics = [#tpu.dimension_semantics<parallel>], iteration_bounds = array<i64: 1>, scalar_prefetch = 0 : i64, scratch_operands = 0 : i64, tpu.core_type = #tpu.core_type<tc>, window_params = [{transform_indices = @transform_0, window_bounds = array<i64: 2, 16>}, {pipeline_mode = #tpu.pipeline_mode<synchronous>, transform_indices = @transform_1, window_bounds = array<i64: 16, 64>}, {pipeline_mode = #tpu.pipeline_mode<synchronous>, transform_indices = @transform_2, window_bounds = array<i64: 1, 64>}, {transform_indices = @transform_3, window_bounds = array<i64: 2, 64>}]} {
    %c0 = arith.constant 0 : index
    %c0_0 = arith.constant 0 : index
    %0 = vector.load %arg1[%c0, %c0_0] : memref<2x16xf32, #tpu.memory_space<vmem>>, vector<2x16xf32>
    %1 = arith.truncf %0 : vector<2x16xf32> to vector<2x16xbf16>
    %c0_1 = arith.constant 0 : index
    %c0_2 = arith.constant 0 : index
    %2 = vector.load %arg2[%c0_1, %c0_2] : memref<16x64xbf16, #tpu.memory_space<vmem>>, vector<16x64xbf16>
    %cst = arith.constant dense<0.000000e+00> : vector<2x64xf32>
    %3 = tpu.matmul %1, %2, %cst {dimension_numbers = #tpu.dot_dimension_numbers<[1], [0], [0], [1], [0, 0, 1, 1], [], []>} : vector<2x16xbf16>, vector<16x64xbf16>, vector<2x64xf32> -> vector<2x64xf32>
    %c0_3 = arith.constant 0 : index
    %c0_4 = arith.constant 0 : index
    %4 = vector.load %arg3[%c0_3, %c0_4] : memref<1x64xf32, #tpu.memory_space<vmem>>, vector<1x64xf32>
    %5 = vector.broadcast %4 : vector<1x64xf32> to vector<2x64xf32>
    %6 = arith.addf %3, %5 : vector<2x64xf32>
    %7 = arith.negf %6 : vector<2x64xf32>
    %8 = math.exp %7 : vector<2x64xf32>
    %cst_5 = arith.constant 1.000000e+00 : f32
    %9 = vector.broadcast %cst_5 : f32 to vector<2x64xf32>
    %10 = arith.addf %9, %8 : vector<2x64xf32>
    %11 = arith.divf %9, %10 : vector<2x64xf32>
    %12 = arith.mulf %6, %11 : vector<2x64xf32>
    %c0_6 = arith.constant 0 : index
    %c0_7 = arith.constant 0 : index
    %13 = vector.load %arg4[%c0_6, %c0_7] : memref<2x64xf32, #tpu.memory_space<vmem>>, vector<2x64xf32>
    tpu.vector_store %arg4[%c0_6, %c0_7], %12 {strides = array<i32>} : memref<2x64xf32, #tpu.memory_space<vmem>>, vector<2x64xf32>,
    return
  }
  func.func @transform_0(%arg0: i32) -> (i32, i32) {
    %c0_i32 = arith.constant 0 : i32
    %c0_i32_0 = arith.constant 0 : i32
    return %arg0, %c0_i32 : i32, i32
  }
  func.func @transform_1(%arg0: i32) -> (i32, i32) {
    %c0_i32 = arith.constant 0 : i32
    %c0_i32_0 = arith.constant 0 : i32
    %c0_i32_1 = arith.constant 0 : i32
    return %c0_i32, %c0_i32_0 : i32, i32
  }
  func.func @transform_2(%arg0: i32) -> (i32, i32) {
    %c0_i32 = arith.constant 0 : i32
    %c0_i32_0 = arith.constant 0 : i32
    %c0_i32_1 = arith.constant 0 : i32
    return %c0_i32, %c0_i32_0 : i32, i32
  }
  func.func @transform_3(%arg0: i32) -> (i32, i32) {
    %c0_i32 = arith.constant 0 : i32
    %c0_i32_0 = arith.constant 0 : i32
    return %arg0, %c0_i32 : i32, i32
  }
}

</mosaic_0001>

<llo_original>
// kernel: tpu_custom_call.1
$region0: #{tpu_custom_call.1}
  #allocation0 [shape = 'u32[]', space=smem, size = 0x4, offset = 0x4, fixed_abs, tag = 'smem constant byte address 0x4 - core index']
  #allocation1 [shape = 'u32[144,128]{1,0:T(1,128)}', space=vmem, size = 0x12000, scoped, tag = 'internal scratch']
  %s0 = inlined_call_operand.hbm [shape: f32[2,16], index: 0, kind: input, shape index: {}]
  %s1 = inlined_call_operand.hbm [shape: bf16[16,64], index: 1, kind: input, shape index: {}]
  %s2 = inlined_call_operand.vmem [shape: f32[1,64], index: 2, kind: input, shape index: {}]
  %s3 = inlined_call_operand.hbm [shape: f32[2,64], index: 3, kind: output, shape index: {}]
  %s4 = sld [smem:[#allocation0]]
  $region30: #{tpu_custom_call.1} parent=0
    _
  %s6 = ssub.s32 1, %s4
  %s7 = scalar_select 0, %s6, %s4
  $region1: #{tpu_custom_call.1} parent=0
    #allocation2 [shape = 'u8[1024]{0}', space=vmem, size = 0x400, scoped, tag = 'input window, operand 0, single buffered']
    #allocation3 [shape = 's32[1]{0}', space=sflag, size = 0x4, scoped, tag = 'scoped memory for tpu_custom_call.1']
    #allocation4 [shape = 's32[1]{0}', space=sflag, size = 0x4, scoped, tag = 'scoped memory for tpu_custom_call.1']
    #allocation5 [shape = 'u8[4096]{0}', space=vmem, size = 0x1000, scoped, tag = 'input window, operand 1, single buffered']
    #allocation6 [shape = 's32[1]{0}', space=sflag, size = 0x4, scoped, tag = 'scoped memory for tpu_custom_call.1']
    #allocation7 [shape = 'u8[1024]{0}', space=vmem, size = 0x400, scoped, tag = 'output window, operand 0, single buffered']
    %8 = vsyncpa [#allocation3], 0
    %9 = vsyncpa [#allocation6], 0
    %10 = vsyncpa [#allocation4], 0
    // Predicated region
    $region2: #{tpu_custom_call.1} parent=1 // pred_check
      _
    $region3: #{tpu_custom_call.1} parent=1 // pred_check_branch
      %12 = sbr.rel (0) target = $region5
    $region4: #{tpu_custom_call.1} parent=1 // pred_region
      %s14 = ssub.s32 32, 32
      %15 = vsyncadd [#allocation3], %s14
      %s17 = sshll.u32 [#allocation2], 4
      %s18 = int_to_ptr.vmem [resolvable:$true] %s17
      %20 = dma.hbm_to_vmem [thread:$0]  %s0, 32, %s18, [#allocation3]
    $region5: #{tpu_custom_call.1} parent=1 // pred_fallthru
      _
    // Predicated region
    $region6: #{tpu_custom_call.1} parent=1 // pred_check
      _
    $region7: #{tpu_custom_call.1} parent=1 // pred_check_branch
      %22 = sbr.rel (0) target = $region9
    $region8: #{tpu_custom_call.1} parent=1 // pred_region
      %s24 = ssub.s32 128, 128
      %25 = vsyncadd [#allocation6], %s24
      %s26 = sshll.u32 [#allocation5], 4
      %s27 = int_to_ptr.vmem [resolvable:$true] %s26
      %32 = dma.hbm_to_vmem [thread:$0]  %s1, 128, %s27, [#allocation6], 64, 64, 4
    $region9: #{tpu_custom_call.1} parent=1 // pred_fallthru
      _
    // Predicated region
    $region10: #{tpu_custom_call.1} parent=1 // pred_check
      _
    $region11: #{tpu_custom_call.1} parent=1 // pred_check_branch
      %34 = sbr.rel (0) target = $region13
    $region12: #{tpu_custom_call.1} parent=1 // pred_region
      _
    $region13: #{tpu_custom_call.1} parent=1 // pred_fallthru
      _
    // Predicated region
    $region14: #{tpu_custom_call.1} parent=1 // pred_check
      _
    $region15: #{tpu_custom_call.1} parent=1 // pred_check_branch
      %36 = sbr.rel (0) target = $region17
    $region16: #{tpu_custom_call.1} parent=1 // pred_region
      %37 = dma.done [#allocation3], 32
    $region17: #{tpu_custom_call.1} parent=1 // pred_fallthru
      _
    // Predicated region
    $region18: #{tpu_custom_call.1} parent=1 // pred_check
      _
    $region19: #{tpu_custom_call.1} parent=1 // pred_check_branch
      %39 = sbr.rel (0) target = $region21
    $region20: #{tpu_custom_call.1} parent=1 // pred_region
      %40 = dma.done [#allocation6], 128
    $region21: #{tpu_custom_call.1} parent=1 // pred_fallthru
      _
    %v42 = vld [vmem:[#allocation2] sm:$0x3]
    %v43 = vpack.c.bf16 %v42, %v42
    %v44 = vld [vmem:[#allocation5] sm:$0xf]
    %v45 = vld [vmem:[#allocation5 + $0x4] sm:$0xf]
    %v46 = vld [vmem:[%s2] sm:$0x1]
    %v48 = vlaneseq
    %v49 = vshrl.u32 %v48, 7
    %v50 = vsub.s32 0, %v49
    %v51 = vrot.slane %v46, %v50
    %v55 = vunpack.c.l.b16 %v44
    %v56 = vunpack.c.l.b16 %v45
    %v57 = vpack.c.b16 %v56, %v55
    %vm59 = vcmask 130048
    %v61 = vsel %vm59, %v43, 0
    %63 = vmatprep.subr.bf16.mxu0 0
    %64 = vmatpush1.bf16.msra.mxu0 %v57
    %65 = vmatprep.subr.bf16.mxu0 0
    %66 = vmatpush1.bf16.msra.mxu0 0
    %67 = vmatprep.subr.bf16.mxu0 0
    %68 = vmatpush1.bf16.msra.mxu0 0
    %69 = vmatprep.subr.bf16.mxu0 0
    %70 = vmatpush1.bf16.msra.mxu0 0
    %71 = vmatprep.subr.bf16.mxu0 0
    %72 = vmatpush1.bf16.msra.mxu0 0
    %73 = vmatprep.subr.bf16.mxu0 0
    %74 = vmatpush1.bf16.msra.mxu0 0
    %75 = vmatprep.subr.bf16.mxu0 0
    %76 = vmatpush1.bf16.msra.mxu0 0
    %77 = vmatprep.subr.bf16.mxu0 0
    %78 = vmatpush1.bf16.msra.mxu0 0
    %79 = vmatprep.subr.bf16.mxu0 0
    %80 = vmatpush1.bf16.msra.mxu0 0
    %81 = vmatprep.subr.bf16.mxu0 0
    %82 = vmatpush1.bf16.msra.mxu0 0
    %83 = vmatprep.subr.bf16.mxu0 0
    %84 = vmatpush1.bf16.msra.mxu0 0
    %85 = vmatprep.subr.bf16.mxu0 0
    %86 = vmatpush1.bf16.msra.mxu0 0
    %87 = vmatprep.subr.bf16.mxu0 0
    %88 = vmatpush1.bf16.msra.mxu0 0
    %89 = vmatprep.subr.bf16.mxu0 0
    %90 = vmatpush1.bf16.msra.mxu0 0
    %91 = vmatprep.subr.bf16.mxu0 0
    %92 = vmatpush1.bf16.msra.mxu0 0
    %93 = vmatprep.subr.bf16.mxu0 0
    %94 = vmatpush1.bf16.msra.mxu0 0
    %95 = vmatprep.mubr.bf16.mxu0 0
    %96 = vmatmul.mubr.bf16.gmra.mrb[0].mxu0 %v61
    %v97 = vpop.f32.mrb[0].mxu0
    %v98 = vadd.f32 %v51, %v97
    %v99 = vpop.f32.mrb[0].mxu0
    %v100 = vpop.f32.mrb[0].mxu0
    %v101 = vpop.f32.mrb[0].mxu0
    %102 = vdwg.mxu0
    %v103 = vxor.u32 %v98, 2147483648
    %v104 = vmul.f32 %v103, 1.442695
    %v105 = vpow.pop %v104
    %v106 = vadd.f32 %v105, 1.0
    %v107 = vrcp.pop %v106
    %v108 = vmul.f32 1.0, %v107
    %v109 = vmul.f32 %v98, %v108
    %vm110 = vcmask 517120
    %111 = vst.msk [vmem:[#allocation7] sm:$0x3] %vm110, %v109
    // Predicated region
    $region22: #{tpu_custom_call.1} parent=1 // pred_check
      _
    $region23: #{tpu_custom_call.1} parent=1 // pred_check_branch
      %113 = sbr.rel (0) target = $region25
    $region24: #{tpu_custom_call.1} parent=1 // pred_region
      %s115 = ssub.s32 32, 32
      %116 = vsyncadd [#allocation4], %s115
      %s118 = sshll.u32 [#allocation7], 4
      %s119 = int_to_ptr.vmem [resolvable:$true] %s118
      %121 = dma.vmem_to_hbm [thread:$0]  %s119, 32, %s3, [#allocation4]
    $region25: #{tpu_custom_call.1} parent=1 // pred_fallthru
      _
    // Predicated region
    $region26: #{tpu_custom_call.1} parent=1 // pred_check
      _
    $region27: #{tpu_custom_call.1} parent=1 // pred_check_branch
      %123 = sbr.rel (0) target = $region29
    $region28: #{tpu_custom_call.1} parent=1 // pred_region
      %124 = dma.done [#allocation4], 32
    $region29: #{tpu_custom_call.1} parent=1 // pred_fallthru
      _
    %125 = vsyncpa [#allocation3], 1
    %126 = vsyncpa [#allocation6], 1
    %127 = vsyncpa [#allocation4], 1

</llo_original>
